<compile_context>
chip_gen: v7x
topology: tpu7x:2x2x1
jax: 0.10.0
libtpu: 0.0.40
codegen_flags: <defaults>
</compile_context>

<pallas_src>
import jax
import jax.numpy as jnp
from jax.experimental import pallas as pl
from jax.experimental.pallas import tpu as pltpu


def _round_up(x, m):
    return ((x + m - 1) // m) * m


def _permute_ifgo_to_ifog(w, H):
    # columns ordered (i, f, g, o) -> (i, f, o, g), so sigmoid lanes are contiguous
    return jnp.concatenate(
        [w[..., 0:2 * H], w[..., 3 * H:4 * H], w[..., 2 * H:3 * H]], axis=-1)


# ----------------------------------------------------------------------------
# One-time parameter packing (hoisted out of the per-call path)
# ----------------------------------------------------------------------------
def prepare_params(params, hidden_dim):
    emb = params["embedding"].astype(jnp.float32)          # (V, E)
    H = hidden_dim
    G = 4 * H
    w_ih = _permute_ifgo_to_ifog(params["w_ih"], H)        # (E, 4H)
    w_hh = _permute_ifgo_to_ifog(params["w_hh"], H)        # (H, 4H)
    b = _permute_ifgo_to_ifog(params["b"], H)              # (1, 4H)
    w_attn = params["w_attn"]                              # (H, 64)
    b_attn = params["b_attn"]                              # (1, 64)

    V = emb.shape[0]
    Vp = _round_up(V, 8)                   # sublane-aligned row-slice boundaries
    NC = _round_up(max(G, 64 + H), 128)    # lane-dense packed column width

    # fold embedding lookup + input projection into a single (V, 4H) table
    table = jnp.dot(emb, w_ih, preferred_element_type=jnp.float32)   # (V, G)
    table = jnp.pad(table, ((0, Vp - V), (0, NC - G)))                # (Vp, NC)
    w_hh_p = jnp.pad(w_hh, ((0, 0), (0, NC - G)))                     # (H, NC)
    # packed output head: h @ w_out = [h @ W_attn | h | 0]
    w_out = jnp.concatenate(
        [w_attn, jnp.eye(H, dtype=jnp.float32),
         jnp.zeros((H, NC - 64 - H), jnp.float32)], axis=1)           # (H, NC)
    W = jnp.concatenate([table, w_hh_p, w_out], axis=0)               # (Vp+2H, NC)

    B = jnp.concatenate(
        [jnp.pad(b, ((0, 0), (0, NC - G))),
         jnp.pad(b_attn, ((0, 0), (0, NC - 64)))], axis=0)            # (2, NC)

    return {"W": W, "B": B, "H": H, "Vp": Vp}


# ----------------------------------------------------------------------------
# Pallas kernel: fused one-hot gather + input projection + unrolled LSTM
#                recurrence + packed attention/rep output
# ----------------------------------------------------------------------------
def _make_kernel(S, Vp, H, NC):
    G = 4 * H

    def kernel(tok_ref,     # VMEM (S, 1)       int32
               w_ref,       # VMEM (Vp+2H, NC)  f32  [table ; W_hh ; W_out]
               b_ref,       # VMEM (2, NC)      f32  [gate bias ; attn bias]
               out_ref):    # VMEM (1, NC)      f32  [attn(64) | h(H) | pad]
        # ---- fused embedding gather + input projection: one MXU matmul ----
        onehot = (tok_ref[...] ==
                  jax.lax.broadcasted_iota(jnp.int32, (S, Vp), 1)
                  ).astype(jnp.float32)                               # (S, Vp)
        gates_x = (jnp.dot(onehot, w_ref[0:Vp, 0:G],
                           preferred_element_type=jnp.float32)
                   + b_ref[0:1, 0:G])                                 # (S, G)

        # recurrent weight held register-resident across the unrolled loop
        w_hh = w_ref[Vp:Vp + H, 0:G]                                  # (H, G)

        # lane mask: sigmoid on (i, f, o) lanes, tanh on g lanes
        is_sig = jax.lax.broadcasted_iota(jnp.int32, (1, G), 1) < 3 * H

        h = jnp.zeros((1, H), jnp.float32)
        c = jnp.zeros((1, H), jnp.float32)
        for t in range(S):                 # fully unrolled, S small & static
            z = gates_x[t:t + 1, :] + jnp.dot(
                h, w_hh, preferred_element_type=jnp.float32)          # (1, G)
            # two full-width EUP pushes + one select (no pre-activation slicing)
            act = jnp.where(is_sig, jax.nn.sigmoid(z), jnp.tanh(z))
            i_g = act[:, 0:H]
            f_g = act[:, H:2 * H]
            o_g = act[:, 2 * H:3 * H]
            g_g = act[:, 3 * H:4 * H]
            c = f_g * c + i_g * g_g
            h = o_g * jnp.tanh(c)

        # ---- packed output head: [sigmoid(h@W_attn+b) | h | 0], one store ----
        zo = (jnp.dot(h, w_ref[Vp + H:Vp + 2 * H, :],
                      preferred_element_type=jnp.float32)
              + b_ref[1:2, :])                                        # (1, NC)
        is_attn = jax.lax.broadcasted_iota(jnp.int32, (1, NC), 1) < 64
        out_ref[...] = jnp.where(is_attn, jax.nn.sigmoid(zo), zo)

    return kernel


# ----------------------------------------------------------------------------
# Per-call forward (jitted; only reshape + pallas_call + fused broadcast)
# ----------------------------------------------------------------------------
def make_forward(prepared):
    W = prepared["W"]
    B = prepared["B"]
    H = prepared["H"]
    Vp = prepared["Vp"]
    NC = W.shape[1]
    vmem = pl.BlockSpec(memory_space=pltpu.MemorySpace.VMEM)

    @jax.jit
    def forward(instructions_batch):
        S = instructions_batch.shape[1]
        # PyTorch uses row 0 only
        tokens = instructions_batch[0].astype(jnp.int32).reshape(S, 1)
        out = pl.pallas_call(
            _make_kernel(S, Vp, H, NC),
            out_shape=jax.ShapeDtypeStruct((1, NC), jnp.float32),
            in_specs=[vmem, vmem, vmem],
            out_specs=vmem,
        )(tokens, W, B)
        attn = out[:, 0:64]
        rep = out[:, 64:64 + H]
        # expand (1, 64) -> (1, 64, 14, 14)  (NCHW, matching PyTorch .expand)
        x_attention = jnp.broadcast_to(attn[:, :, None, None], (1, 64, 14, 14))
        return x_attention, rep

    return forward


# ----------------------------------------------------------------------------
# Pure-JAX reference (uses original (i,f,g,o) layout)
# ----------------------------------------------------------------------------
def reference_forward(instructions_batch, params):
    tokens = instructions_batch[0].astype(jnp.int32)
    emb = params["embedding"]
    w_ih, w_hh, b = params["w_ih"], params["w_hh"], params["b"]
    w_attn, b_attn = params["w_attn"], params["b_attn"]
    H = w_hh.shape[0]

    h = jnp.zeros((1, H), jnp.float32)
    c = jnp.zeros((1, H), jnp.float32)
    for t in range(tokens.shape[0]):
        x = emb[tokens[t]][None, :]
        gates = x @ w_ih + h @ w_hh + b
        i_g = jax.nn.sigmoid(gates[:, 0:H])
        f_g = jax.nn.sigmoid(gates[:, H:2 * H])
        g_g = jnp.tanh(gates[:, 2 * H:3 * H])
        o_g = jax.nn.sigmoid(gates[:, 3 * H:4 * H])
        c = f_g * c + i_g * g_g
        h = o_g * jnp.tanh(c)
    attn = jax.nn.sigmoid(h @ w_attn + b_attn)
    return jnp.broadcast_to(attn[:, :, None, None], (1, 64, 14, 14)), h


# ----------------------------------------------------------------------------
# Deterministic parameter initialization (synthetic; no checkpoint load)
# ----------------------------------------------------------------------------
def init_params(key, vocab_size, emb_dim, hidden_dim):
    k = jax.random.split(key, 6)
    scale = 0.1
    return {
        "embedding": scale * jax.random.normal(k[0], (vocab_size, emb_dim), jnp.float32),
        "w_ih": scale * jax.random.normal(k[1], (emb_dim, 4 * hidden_dim), jnp.float32),
        "w_hh": scale * jax.random.normal(k[2], (hidden_dim, 4 * hidden_dim), jnp.float32),
        "b": scale * jax.random.normal(k[3], (1, 4 * hidden_dim), jnp.float32),
        "w_attn": scale * jax.random.normal(k[4], (hidden_dim, 64), jnp.float32),
        "b_attn": scale * jax.random.normal(k[5], (1, 64), jnp.float32),
    }


if __name__ == "__main__":
    # small shapes consistent with the module
    emb_dim, hidden_dim, vocab_size = 32, 32, 50
    batch, seq_len = 2, 8
    image_width, image_height = 32, 32  # unused by forward (attention is hardcoded 14x14)

    key = jax.random.PRNGKey(0)
    k_params, k_tokens = jax.random.split(key)
    params = init_params(k_params, vocab_size, emb_dim, hidden_dim)
    instructions_batch = jax.random.randint(
        k_tokens, (batch, seq_len), minval=0, maxval=vocab_size, dtype=jnp.int32)

    prepared = prepare_params(params, hidden_dim)     # one-time packing
    forward = make_forward(prepared)

    x_attention, x_instr_rep = jax.block_until_ready(forward(instructions_batch))

    ref_attn, ref_rep = reference_forward(instructions_batch, params)

    assert x_attention.shape == (1, 64, 14, 14)
    assert x_instr_rep.shape == (1, hidden_dim)
    assert jnp.allclose(x_attention, ref_attn, atol=2e-5, rtol=2e-5)
    assert jnp.allclose(x_instr_rep, ref_rep, atol=2e-5, rtol=2e-5)

    print("KERNEL_OK")
</pallas_src>

<mosaic_0001>
module attributes {stable_mosaic.version = 11 : i64} {
  func.func @kernel(%arg0: memref<8x1xi32, #tpu.memory_space<vmem>>, %arg1: memref<120x128xf32, #tpu.memory_space<vmem>>, %arg2: memref<2x128xf32, #tpu.memory_space<vmem>>, %arg3: memref<1x128xf32, #tpu.memory_space<vmem>>) attributes {dimension_semantics = [], scalar_prefetch = 0 : i64, scratch_operands = 0 : i64, tpu.core_type = #tpu.core_type<tc>} {
    %c0 = arith.constant 0 : index
    %c0_0 = arith.constant 0 : index
    %0 = vector.load %arg0[%c0, %c0_0] : memref<8x1xi32, #tpu.memory_space<vmem>>, vector<8x1xi32>
    %1 = tpu.iota {dimensions = array<i32: 1>} : vector<8x56xi32>
    %2 = vector.broadcast %0 : vector<8x1xi32> to vector<8x56xi32>
    %3 = arith.cmpi eq, %2, %1 : vector<8x56xi32>
    %4 = arith.extui %3 : vector<8x56xi1> to vector<8x56xi32>
    %5 = arith.sitofp %4 : vector<8x56xi32> to vector<8x56xf32>
    %c0_1 = arith.constant 0 : index
    %c0_2 = arith.constant 0 : index
    %6 = vector.load %arg1[%c0_1, %c0_2] : memref<120x128xf32, #tpu.memory_space<vmem>>, vector<56x128xf32>
    %cst = arith.constant dense<0.000000e+00> : vector<8x128xf32>
    %7 = tpu.matmul %5, %6, %cst {dimension_numbers = #tpu.dot_dimension_numbers<[1], [0], [0], [1], [0, 0, 1, 1], [], []>} : vector<8x56xf32>, vector<56x128xf32>, vector<8x128xf32> -> vector<8x128xf32>
    %c0_3 = arith.constant 0 : index
    %c0_4 = arith.constant 0 : index
    %8 = vector.load %arg2[%c0_3, %c0_4] : memref<2x128xf32, #tpu.memory_space<vmem>>, vector<1x128xf32>
    %9 = vector.broadcast %8 : vector<1x128xf32> to vector<8x128xf32>
    %10 = arith.addf %7, %9 : vector<8x128xf32>
    %c56 = arith.constant 56 : index
    %c0_5 = arith.constant 0 : index
    %11 = vector.load %arg1[%c56, %c0_5] : memref<120x128xf32, #tpu.memory_space<vmem>>, vector<32x128xf32>
    %12 = tpu.iota {dimensions = array<i32: 1>} : vector<1x128xi32>
    %c96_i32 = arith.constant 96 : i32
    %13 = vector.broadcast %c96_i32 : i32 to vector<1x128xi32>
    %14 = arith.cmpi slt, %12, %13 : vector<1x128xi32>
    %cst_6 = arith.constant 0.000000e+00 : f32
    %15 = vector.broadcast %cst_6 : f32 to vector<1x32xf32>
    %cst_7 = arith.constant 0.000000e+00 : f32
    %16 = vector.broadcast %cst_7 : f32 to vector<1x32xf32>
    %17 = vector.extract_strided_slice %10 {offsets = [0, 0], sizes = [1, 128], strides = [1, 1]} : vector<8x128xf32> to vector<1x128xf32>
    %cst_8 = arith.constant dense<0.000000e+00> : vector<1x128xf32>
    %18 = tpu.matmul %15, %11, %cst_8 {dimension_numbers = #tpu.dot_dimension_numbers<[1], [0], [0], [1], [0, 0, 1, 1], [], []>} : vector<1x32xf32>, vector<32x128xf32>, vector<1x128xf32> -> vector<1x128xf32>
    %19 = arith.addf %17, %18 : vector<1x128xf32>
    %20 = arith.negf %19 : vector<1x128xf32>
    %21 = math.exp %20 : vector<1x128xf32>
    %cst_9 = arith.constant 1.000000e+00 : f32
    %22 = vector.broadcast %cst_9 : f32 to vector<1x128xf32>
    %23 = arith.addf %22, %21 : vector<1x128xf32>
    %24 = arith.divf %22, %23 : vector<1x128xf32>
    %25 = math.tanh %19 : vector<1x128xf32>
    %26 = arith.select %14, %24, %25 : vector<1x128xi1>, vector<1x128xf32>
    %27 = vector.extract_strided_slice %26 {offsets = [0, 0], sizes = [1, 32], strides = [1, 1]} : vector<1x128xf32> to vector<1x32xf32>
    %28 = vector.extract_strided_slice %26 {offsets = [0, 32], sizes = [1, 32], strides = [1, 1]} : vector<1x128xf32> to vector<1x32xf32>
    %29 = vector.extract_strided_slice %26 {offsets = [0, 64], sizes = [1, 32], strides = [1, 1]} : vector<1x128xf32> to vector<1x32xf32>
    %30 = vector.extract_strided_slice %26 {offsets = [0, 96], sizes = [1, 32], strides = [1, 1]} : vector<1x128xf32> to vector<1x32xf32>
    %31 = arith.mulf %28, %16 : vector<1x32xf32>
    %32 = arith.mulf %27, %30 : vector<1x32xf32>
    %33 = arith.addf %31, %32 : vector<1x32xf32>
    %34 = math.tanh %33 : vector<1x32xf32>
    %35 = arith.mulf %29, %34 : vector<1x32xf32>
    %36 = vector.extract_strided_slice %10 {offsets = [1, 0], sizes = [1, 128], strides = [1, 1]} : vector<8x128xf32> to vector<1x128xf32>
    %cst_10 = arith.constant dense<0.000000e+00> : vector<1x128xf32>
    %37 = tpu.matmul %35, %11, %cst_10 {dimension_numbers = #tpu.dot_dimension_numbers<[1], [0], [0], [1], [0, 0, 1, 1], [], []>} : vector<1x32xf32>, vector<32x128xf32>, vector<1x128xf32> -> vector<1x128xf32>
    %38 = arith.addf %36, %37 : vector<1x128xf32>
    %39 = arith.negf %38 : vector<1x128xf32>
    %40 = math.exp %39 : vector<1x128xf32>
    %cst_11 = arith.constant 1.000000e+00 : f32
    %41 = vector.broadcast %cst_11 : f32 to vector<1x128xf32>
    %42 = arith.addf %41, %40 : vector<1x128xf32>
    %43 = arith.divf %41, %42 : vector<1x128xf32>
    %44 = math.tanh %38 : vector<1x128xf32>
    %45 = arith.select %14, %43, %44 : vector<1x128xi1>, vector<1x128xf32>
    %46 = vector.extract_strided_slice %45 {offsets = [0, 0], sizes = [1, 32], strides = [1, 1]} : vector<1x128xf32> to vector<1x32xf32>
    %47 = vector.extract_strided_slice %45 {offsets = [0, 32], sizes = [1, 32], strides = [1, 1]} : vector<1x128xf32> to vector<1x32xf32>
    %48 = vector.extract_strided_slice %45 {offsets = [0, 64], sizes = [1, 32], strides = [1, 1]} : vector<1x128xf32> to vector<1x32xf32>
    %49 = vector.extract_strided_slice %45 {offsets = [0, 96], sizes = [1, 32], strides = [1, 1]} : vector<1x128xf32> to vector<1x32xf32>
    %50 = arith.mulf %47, %33 : vector<1x32xf32>
    %51 = arith.mulf %46, %49 : vector<1x32xf32>
    %52 = arith.addf %50, %51 : vector<1x32xf32>
    %53 = math.tanh %52 : vector<1x32xf32>
    %54 = arith.mulf %48, %53 : vector<1x32xf32>
    %55 = vector.extract_strided_slice %10 {offsets = [2, 0], sizes = [1, 128], strides = [1, 1]} : vector<8x128xf32> to vector<1x128xf32>
    %cst_12 = arith.constant dense<0.000000e+00> : vector<1x128xf32>
    %56 = tpu.matmul %54, %11, %cst_12 {dimension_numbers = #tpu.dot_dimension_numbers<[1], [0], [0], [1], [0, 0, 1, 1], [], []>} : vector<1x32xf32>, vector<32x128xf32>, vector<1x128xf32> -> vector<1x128xf32>
    %57 = arith.addf %55, %56 : vector<1x128xf32>
    %58 = arith.negf %57 : vector<1x128xf32>
    %59 = math.exp %58 : vector<1x128xf32>
    %cst_13 = arith.constant 1.000000e+00 : f32
    %60 = vector.broadcast %cst_13 : f32 to vector<1x128xf32>
    %61 = arith.addf %60, %59 : vector<1x128xf32>
    %62 = arith.divf %60, %61 : vector<1x128xf32>
    %63 = math.tanh %57 : vector<1x128xf32>
    %64 = arith.select %14, %62, %63 : vector<1x128xi1>, vector<1x128xf32>
    %65 = vector.extract_strided_slice %64 {offsets = [0, 0], sizes = [1, 32], strides = [1, 1]} : vector<1x128xf32> to vector<1x32xf32>
    %66 = vector.extract_strided_slice %64 {offsets = [0, 32], sizes = [1, 32], strides = [1, 1]} : vector<1x128xf32> to vector<1x32xf32>
    %67 = vector.extract_strided_slice %64 {offsets = [0, 64], sizes = [1, 32], strides = [1, 1]} : vector<1x128xf32> to vector<1x32xf32>
    %68 = vector.extract_strided_slice %64 {offsets = [0, 96], sizes = [1, 32], strides = [1, 1]} : vector<1x128xf32> to vector<1x32xf32>
    %69 = arith.mulf %66, %52 : vector<1x32xf32>
    %70 = arith.mulf %65, %68 : vector<1x32xf32>
    %71 = arith.addf %69, %70 : vector<1x32xf32>
    %72 = math.tanh %71 : vector<1x32xf32>
    %73 = arith.mulf %67, %72 : vector<1x32xf32>
    %74 = vector.extract_strided_slice %10 {offsets = [3, 0], sizes = [1, 128], strides = [1, 1]} : vector<8x128xf32> to vector<1x128xf32>
    %cst_14 = arith.constant dense<0.000000e+00> : vector<1x128xf32>
    %75 = tpu.matmul %73, %11, %cst_14 {dimension_numbers = #tpu.dot_dimension_numbers<[1], [0], [0], [1], [0, 0, 1, 1], [], []>} : vector<1x32xf32>, vector<32x128xf32>, vector<1x128xf32> -> vector<1x128xf32>
    %76 = arith.addf %74, %75 : vector<1x128xf32>
    %77 = arith.negf %76 : vector<1x128xf32>
    %78 = math.exp %77 : vector<1x128xf32>
    %cst_15 = arith.constant 1.000000e+00 : f32
    %79 = vector.broadcast %cst_15 : f32 to vector<1x128xf32>
    %80 = arith.addf %79, %78 : vector<1x128xf32>
    %81 = arith.divf %79, %80 : vector<1x128xf32>
    %82 = math.tanh %76 : vector<1x128xf32>
    %83 = arith.select %14, %81, %82 : vector<1x128xi1>, vector<1x128xf32>
    %84 = vector.extract_strided_slice %83 {offsets = [0, 0], sizes = [1, 32], strides = [1, 1]} : vector<1x128xf32> to vector<1x32xf32>
    %85 = vector.extract_strided_slice %83 {offsets = [0, 32], sizes = [1, 32], strides = [1, 1]} : vector<1x128xf32> to vector<1x32xf32>
    %86 = vector.extract_strided_slice %83 {offsets = [0, 64], sizes = [1, 32], strides = [1, 1]} : vector<1x128xf32> to vector<1x32xf32>
    %87 = vector.extract_strided_slice %83 {offsets = [0, 96], sizes = [1, 32], strides = [1, 1]} : vector<1x128xf32> to vector<1x32xf32>
    %88 = arith.mulf %85, %71 : vector<1x32xf32>
    %89 = arith.mulf %84, %87 : vector<1x32xf32>
    %90 = arith.addf %88, %89 : vector<1x32xf32>
    %91 = math.tanh %90 : vector<1x32xf32>
    %92 = arith.mulf %86, %91 : vector<1x32xf32>
    %93 = vector.extract_strided_slice %10 {offsets = [4, 0], sizes = [1, 128], strides = [1, 1]} : vector<8x128xf32> to vector<1x128xf32>
    %cst_16 = arith.constant dense<0.000000e+00> : vector<1x128xf32>
    %94 = tpu.matmul %92, %11, %cst_16 {dimension_numbers = #tpu.dot_dimension_numbers<[1], [0], [0], [1], [0, 0, 1, 1], [], []>} : vector<1x32xf32>, vector<32x128xf32>, vector<1x128xf32> -> vector<1x128xf32>
    %95 = arith.addf %93, %94 : vector<1x128xf32>
    %96 = arith.negf %95 : vector<1x128xf32>
    %97 = math.exp %96 : vector<1x128xf32>
    %cst_17 = arith.constant 1.000000e+00 : f32
    %98 = vector.broadcast %cst_17 : f32 to vector<1x128xf32>
    %99 = arith.addf %98, %97 : vector<1x128xf32>
    %100 = arith.divf %98, %99 : vector<1x128xf32>
    %101 = math.tanh %95 : vector<1x128xf32>
    %102 = arith.select %14, %100, %101 : vector<1x128xi1>, vector<1x128xf32>
    %103 = vector.extract_strided_slice %102 {offsets = [0, 0], sizes = [1, 32], strides = [1, 1]} : vector<1x128xf32> to vector<1x32xf32>
    %104 = vector.extract_strided_slice %102 {offsets = [0, 32], sizes = [1, 32], strides = [1, 1]} : vector<1x128xf32> to vector<1x32xf32>
    %105 = vector.extract_strided_slice %102 {offsets = [0, 64], sizes = [1, 32], strides = [1, 1]} : vector<1x128xf32> to vector<1x32xf32>
    %106 = vector.extract_strided_slice %102 {offsets = [0, 96], sizes = [1, 32], strides = [1, 1]} : vector<1x128xf32> to vector<1x32xf32>
    %107 = arith.mulf %104, %90 : vector<1x32xf32>
    %108 = arith.mulf %103, %106 : vector<1x32xf32>
    %109 = arith.addf %107, %108 : vector<1x32xf32>
    %110 = math.tanh %109 : vector<1x32xf32>
    %111 = arith.mulf %105, %110 : vector<1x32xf32>
    %112 = vector.extract_strided_slice %10 {offsets = [5, 0], sizes = [1, 128], strides = [1, 1]} : vector<8x128xf32> to vector<1x128xf32>
    %cst_18 = arith.constant dense<0.000000e+00> : vector<1x128xf32>
    %113 = tpu.matmul %111, %11, %cst_18 {dimension_numbers = #tpu.dot_dimension_numbers<[1], [0], [0], [1], [0, 0, 1, 1], [], []>} : vector<1x32xf32>, vector<32x128xf32>, vector<1x128xf32> -> vector<1x128xf32>
    %114 = arith.addf %112, %113 : vector<1x128xf32>
    %115 = arith.negf %114 : vector<1x128xf32>
    %116 = math.exp %115 : vector<1x128xf32>
    %cst_19 = arith.constant 1.000000e+00 : f32
    %117 = vector.broadcast %cst_19 : f32 to vector<1x128xf32>
    %118 = arith.addf %117, %116 : vector<1x128xf32>
    %119 = arith.divf %117, %118 : vector<1x128xf32>
    %120 = math.tanh %114 : vector<1x128xf32>
    %121 = arith.select %14, %119, %120 : vector<1x128xi1>, vector<1x128xf32>
    %122 = vector.extract_strided_slice %121 {offsets = [0, 0], sizes = [1, 32], strides = [1, 1]} : vector<1x128xf32> to vector<1x32xf32>
    %123 = vector.extract_strided_slice %121 {offsets = [0, 32], sizes = [1, 32], strides = [1, 1]} : vector<1x128xf32> to vector<1x32xf32>
    %124 = vector.extract_strided_slice %121 {offsets = [0, 64], sizes = [1, 32], strides = [1, 1]} : vector<1x128xf32> to vector<1x32xf32>
    %125 = vector.extract_strided_slice %121 {offsets = [0, 96], sizes = [1, 32], strides = [1, 1]} : vector<1x128xf32> to vector<1x32xf32>
    %126 = arith.mulf %123, %109 : vector<1x32xf32>
    %127 = arith.mulf %122, %125 : vector<1x32xf32>
    %128 = arith.addf %126, %127 : vector<1x32xf32>
    %129 = math.tanh %128 : vector<1x32xf32>
    %130 = arith.mulf %124, %129 : vector<1x32xf32>
    %131 = vector.extract_strided_slice %10 {offsets = [6, 0], sizes = [1, 128], strides = [1, 1]} : vector<8x128xf32> to vector<1x128xf32>
    %cst_20 = arith.constant dense<0.000000e+00> : vector<1x128xf32>
    %132 = tpu.matmul %130, %11, %cst_20 {dimension_numbers = #tpu.dot_dimension_numbers<[1], [0], [0], [1], [0, 0, 1, 1], [], []>} : vector<1x32xf32>, vector<32x128xf32>, vector<1x128xf32> -> vector<1x128xf32>
    %133 = arith.addf %131, %132 : vector<1x128xf32>
    %134 = arith.negf %133 : vector<1x128xf32>
    %135 = math.exp %134 : vector<1x128xf32>
    %cst_21 = arith.constant 1.000000e+00 : f32
    %136 = vector.broadcast %cst_21 : f32 to vector<1x128xf32>
    %137 = arith.addf %136, %135 : vector<1x128xf32>
    %138 = arith.divf %136, %137 : vector<1x128xf32>
    %139 = math.tanh %133 : vector<1x128xf32>
    %140 = arith.select %14, %138, %139 : vector<1x128xi1>, vector<1x128xf32>
    %141 = vector.extract_strided_slice %140 {offsets = [0, 0], sizes = [1, 32], strides = [1, 1]} : vector<1x128xf32> to vector<1x32xf32>
    %142 = vector.extract_strided_slice %140 {offsets = [0, 32], sizes = [1, 32], strides = [1, 1]} : vector<1x128xf32> to vector<1x32xf32>
    %143 = vector.extract_strided_slice %140 {offsets = [0, 64], sizes = [1, 32], strides = [1, 1]} : vector<1x128xf32> to vector<1x32xf32>
    %144 = vector.extract_strided_slice %140 {offsets = [0, 96], sizes = [1, 32], strides = [1, 1]} : vector<1x128xf32> to vector<1x32xf32>
    %145 = arith.mulf %142, %128 : vector<1x32xf32>
    %146 = arith.mulf %141, %144 : vector<1x32xf32>
    %147 = arith.addf %145, %146 : vector<1x32xf32>
    %148 = math.tanh %147 : vector<1x32xf32>
    %149 = arith.mulf %143, %148 : vector<1x32xf32>
    %150 = vector.extract_strided_slice %10 {offsets = [7, 0], sizes = [1, 128], strides = [1, 1]} : vector<8x128xf32> to vector<1x128xf32>
    %cst_22 = arith.constant dense<0.000000e+00> : vector<1x128xf32>
    %151 = tpu.matmul %149, %11, %cst_22 {dimension_numbers = #tpu.dot_dimension_numbers<[1], [0], [0], [1], [0, 0, 1, 1], [], []>} : vector<1x32xf32>, vector<32x128xf32>, vector<1x128xf32> -> vector<1x128xf32>
    %152 = arith.addf %150, %151 : vector<1x128xf32>
    %153 = arith.negf %152 : vector<1x128xf32>
    %154 = math.exp %153 : vector<1x128xf32>
    %cst_23 = arith.constant 1.000000e+00 : f32
    %155 = vector.broadcast %cst_23 : f32 to vector<1x128xf32>
    %156 = arith.addf %155, %154 : vector<1x128xf32>
    %157 = arith.divf %155, %156 : vector<1x128xf32>
    %158 = math.tanh %152 : vector<1x128xf32>
    %159 = arith.select %14, %157, %158 : vector<1x128xi1>, vector<1x128xf32>
    %160 = vector.extract_strided_slice %159 {offsets = [0, 0], sizes = [1, 32], strides = [1, 1]} : vector<1x128xf32> to vector<1x32xf32>
    %161 = vector.extract_strided_slice %159 {offsets = [0, 32], sizes = [1, 32], strides = [1, 1]} : vector<1x128xf32> to vector<1x32xf32>
    %162 = vector.extract_strided_slice %159 {offsets = [0, 64], sizes = [1, 32], strides = [1, 1]} : vector<1x128xf32> to vector<1x32xf32>
    %163 = vector.extract_strided_slice %159 {offsets = [0, 96], sizes = [1, 32], strides = [1, 1]} : vector<1x128xf32> to vector<1x32xf32>
    %164 = arith.mulf %161, %147 : vector<1x32xf32>
    %165 = arith.mulf %160, %163 : vector<1x32xf32>
    %166 = arith.addf %164, %165 : vector<1x32xf32>
    %167 = math.tanh %166 : vector<1x32xf32>
    %168 = arith.mulf %162, %167 : vector<1x32xf32>
    %c88 = arith.constant 88 : index
    %c0_24 = arith.constant 0 : index
    %169 = vector.load %arg1[%c88, %c0_24] : memref<120x128xf32, #tpu.memory_space<vmem>>, vector<32x128xf32>
    %cst_25 = arith.constant dense<0.000000e+00> : vector<1x128xf32>
    %170 = tpu.matmul %168, %169, %cst_25 {dimension_numbers = #tpu.dot_dimension_numbers<[1], [0], [0], [1], [0, 0, 1, 1], [], []>} : vector<1x32xf32>, vector<32x128xf32>, vector<1x128xf32> -> vector<1x128xf32>
    %c1 = arith.constant 1 : index
    %c0_26 = arith.constant 0 : index
    %171 = vector.load %arg2[%c1, %c0_26] : memref<2x128xf32, #tpu.memory_space<vmem>>, vector<1x128xf32>
    %172 = arith.addf %170, %171 : vector<1x128xf32>
    %173 = tpu.iota {dimensions = array<i32: 1>} : vector<1x128xi32>
    %c64_i32 = arith.constant 64 : i32
    %174 = vector.broadcast %c64_i32 : i32 to vector<1x128xi32>
    %175 = arith.cmpi slt, %173, %174 : vector<1x128xi32>
    %176 = arith.negf %172 : vector<1x128xf32>
    %177 = math.exp %176 : vector<1x128xf32>
    %cst_27 = arith.constant 1.000000e+00 : f32
    %178 = vector.broadcast %cst_27 : f32 to vector<1x128xf32>
    %179 = arith.addf %178, %177 : vector<1x128xf32>
    %180 = arith.divf %178, %179 : vector<1x128xf32>
    %181 = arith.select %175, %180, %172 : vector<1x128xi1>, vector<1x128xf32>
    %c0_28 = arith.constant 0 : index
    %c0_29 = arith.constant 0 : index
    %182 = vector.load %arg3[%c0_28, %c0_29] : memref<1x128xf32, #tpu.memory_space<vmem>>, vector<1x128xf32>
    tpu.vector_store %arg3[%c0_28, %c0_29], %181 {strides = array<i32>} : memref<1x128xf32, #tpu.memory_space<vmem>>, vector<1x128xf32>,
    return
  }
}

</mosaic_0001>

<llo_original>
// kernel: forward.1
$region0: #{forward.1}
  #allocation0 [shape = 'u32[]', space=smem, size = 0x4, offset = 0x4, fixed_abs, tag = 'smem constant byte address 0x4 - core index']
  #allocation1 [shape = 'u32[144,128]{1,0:T(1,128)}', space=vmem, size = 0x12000, scoped, tag = 'internal scratch']
  %s0 = inlined_call_operand.vmem [shape: s32[8,1], index: 0, kind: input, shape index: {}]
  %s1 = inlined_call_operand.hbm [shape: f32[120,128], index: 1, kind: input, shape index: {}]
  %s2 = inlined_call_operand.vmem [shape: f32[2,128], index: 2, kind: input, shape index: {}]
  %s3 = inlined_call_operand.vmem [shape: f32[1,128], index: 3, kind: output, shape index: {}]
  %s4 = sld [smem:[#allocation0]]
  $region26: #{forward.1} parent=0
    _
  %s6 = ssub.s32 1, %s4
  %s7 = scalar_select 0, %s6, %s4
  $region1: #{forward.1} parent=0
    #allocation2 [shape = 'u8[61440]{0}', space=vmem, size = 0xf000, scoped, tag = 'input window, operand 1, single buffered']
    #allocation3 [shape = 's32[1]{0}', space=sflag, size = 0x4, scoped, tag = 'scoped memory for forward.1']
    %8 = vsyncpa [#allocation3], 0
    // Predicated region
    $region2: #{forward.1} parent=1 // pred_check
      _
    $region3: #{forward.1} parent=1 // pred_check_branch
      %10 = sbr.rel (0) target = $region5
    $region4: #{forward.1} parent=1 // pred_region
      _
    $region5: #{forward.1} parent=1 // pred_fallthru
      _
    // Predicated region
    $region6: #{forward.1} parent=1 // pred_check
      _
    $region7: #{forward.1} parent=1 // pred_check_branch
      %12 = sbr.rel (0) target = $region9
    $region8: #{forward.1} parent=1 // pred_region
      %s14 = ssub.s32 1920, 1920
      %15 = vsyncadd [#allocation3], %s14
      %s16 = sshll.u32 [#allocation2], 4
      %s17 = int_to_ptr.vmem [resolvable:$true] %s16
      %22 = dma.hbm_to_vmem [thread:$0]  %s1, 1920, %s17, [#allocation3], 128, 128, 8
    $region9: #{forward.1} parent=1 // pred_fallthru
      _
    // Predicated region
    $region10: #{forward.1} parent=1 // pred_check
      _
    $region11: #{forward.1} parent=1 // pred_check_branch
      %24 = sbr.rel (0) target = $region13
    $region12: #{forward.1} parent=1 // pred_region
      _
    $region13: #{forward.1} parent=1 // pred_fallthru
      _
    // Predicated region
    $region14: #{forward.1} parent=1 // pred_check
      _
    $region15: #{forward.1} parent=1 // pred_check_branch
      %26 = sbr.rel (0) target = $region17
    $region16: #{forward.1} parent=1 // pred_region
      %27 = dma.done [#allocation3], 1920
    $region17: #{forward.1} parent=1 // pred_fallthru
      _
    %v28 = vld [vmem:[%s0] sm:$0xff]
    %v29 = vlaneseq
    %v30 = vand.u32 %v29, 127
    %31 = vset.pattern.permute.xlu0 0
    %32 = vperm.xlu0 %31, %v28
    %v33 = vpop.permute.xlu0 %32
    %vm34 = vcmp.eq.s32.totalorder %v33, %v30
    %v35 = vsel %vm34, 1, 0
    %v36 = vcvt.s32.f32 %v35
    %v37 = vld [vmem:[#allocation2] sm:$0xff]
    %v38 = vld [vmem:[#allocation2 + $0x8] sm:$0xff]
    %v39 = vld [vmem:[#allocation2 + $0x10] sm:$0xff]
    %v40 = vld [vmem:[#allocation2 + $0x18] sm:$0xff]
    %v41 = vld [vmem:[#allocation2 + $0x20] sm:$0xff]
    %v42 = vld [vmem:[#allocation2 + $0x28] sm:$0xff]
    %v43 = vld [vmem:[#allocation2 + $0x30] sm:$0xff]
    %v44 = vld [vmem:[%s2] sm:$0x1]
    %v45 = vlaneseq
    %v46 = vshrl.u32 %v45, 7
    %v47 = vsub.s32 0, %v46
    %v48 = vrot.slane %v44, %v47
    %vm49 = vcmask 457728
    %v51 = vsel %vm49, %v36, 0
    %53 = vmatprep.subr.mxu0 0.0
    %54 = vmatpush1.msra.mxu0 %v37
    %55 = vmatprep.subr.mxu0 0.0
    %56 = vmatpush1.msra.mxu0 %v38
    %57 = vmatprep.subr.mxu0 0.0
    %58 = vmatpush1.msra.mxu0 %v39
    %59 = vmatprep.subr.mxu0 0.0
    %60 = vmatpush1.msra.mxu0 %v40
    %61 = vmatprep.subr.mxu0 0.0
    %62 = vmatpush1.msra.mxu0 %v41
    %63 = vmatprep.subr.mxu0 0.0
    %64 = vmatpush1.msra.mxu0 %v42
    %65 = vmatprep.subr.mxu0 0.0
    %66 = vmatpush1.msra.mxu0 %v43
    %67 = vmatprep.subr.mxu0 0.0
    %68 = vmatpush1.msra.mxu0 0.0
    %69 = vmatprep.subr.mxu0 0.0
    %70 = vmatpush1.msra.mxu0 0.0
    %71 = vmatprep.subr.mxu0 0.0
    %72 = vmatpush1.msra.mxu0 0.0
    %73 = vmatprep.subr.mxu0 0.0
    %74 = vmatpush1.msra.mxu0 0.0
    %75 = vmatprep.subr.mxu0 0.0
    %76 = vmatpush1.msra.mxu0 0.0
    %77 = vmatprep.subr.mxu0 0.0
    %78 = vmatpush1.msra.mxu0 0.0
    %79 = vmatprep.subr.mxu0 0.0
    %80 = vmatpush1.msra.mxu0 0.0
    %81 = vmatprep.subr.mxu0 0.0
    %82 = vmatpush1.msra.mxu0 0.0
    %83 = vmatprep.subr.mxu0 0.0
    %84 = vmatpush1.msra.mxu0 0.0
    %85 = vmatprep.subr.mxu0 0.0
    %86 = vmatpush1.msra.mxu0 0.0
    %87 = vmatprep.subr.mxu0 0.0
    %88 = vmatpush1.msra.mxu0 0.0
    %89 = vmatprep.subr.mxu0 0.0
    %90 = vmatpush1.msra.mxu0 0.0
    %91 = vmatprep.subr.mxu0 0.0
    %92 = vmatpush1.msra.mxu0 0.0
    %93 = vmatprep.subr.mxu0 0.0
    %94 = vmatpush1.msra.mxu0 0.0
    %95 = vmatprep.subr.mxu0 0.0
    %96 = vmatpush1.msra.mxu0 0.0
    %97 = vmatprep.subr.mxu0 0.0
    %98 = vmatpush1.msra.mxu0 0.0
    %99 = vmatprep.subr.mxu0 0.0
    %100 = vmatpush1.msra.mxu0 0.0
    %101 = vmatprep.subr.mxu0 0.0
    %102 = vmatpush1.msra.mxu0 0.0
    %103 = vmatprep.subr.mxu0 0.0
    %104 = vmatpush1.msra.mxu0 0.0
    %105 = vmatprep.subr.mxu0 0.0
    %106 = vmatpush1.msra.mxu0 0.0
    %107 = vmatprep.subr.mxu0 0.0
    %108 = vmatpush1.msra.mxu0 0.0
    %109 = vmatprep.subr.mxu0 0.0
    %110 = vmatpush1.msra.mxu0 0.0
    %111 = vmatprep.subr.mxu0 0.0
    %112 = vmatpush1.msra.mxu0 0.0
    %113 = vmatprep.subr.mxu0 0.0
    %114 = vmatpush1.msra.mxu0 0.0
    %115 = vmatprep.subr.mxu0 0.0
    %116 = vmatpush1.msra.mxu0 0.0
    %117 = vmatprep.mubr.f32.mxu0 0.0
    %118 = vmatmul.mubr.f32.gmra.mrb[0].mxu0 %v51
    %v119 = vpop.f32.mrb[0].mxu0
    %v120 = vadd.f32 %v48, %v119
    %v121 = vpop.f32.mrb[0].mxu0
    %122 = vdwg.mxu0
    %v123 = vld [vmem:[#allocation2 + $0x38] sm:$0xff]
    %v124 = vld [vmem:[#allocation2 + $0x40] sm:$0xff]
    %v125 = vld [vmem:[#allocation2 + $0x48] sm:$0xff]
    %v126 = vld [vmem:[#allocation2 + $0x50] sm:$0xff]
    %vm127 = vcmp.lt.s32.totalorder %v30, 96
    %vm128 = vcmask 261120
    %v130 = vsel %vm128, 0.0, 0
    %132 = vmatprep.subr.mxu0 0.0
    %133 = vmatpush1.msra.mxu0 %v123
    %134 = vmatprep.subr.mxu0 0.0
    %135 = vmatpush1.msra.mxu0 %v124
    %136 = vmatprep.subr.mxu0 0.0
    %137 = vmatpush1.msra.mxu0 %v125
    %138 = vmatprep.subr.mxu0 0.0
    %139 = vmatpush1.msra.mxu0 %v126
    %140 = vmatprep.subr.mxu0 0.0
    %141 = vmatpush1.msra.mxu0 0.0
    %142 = vmatprep.subr.mxu0 0.0
    %143 = vmatpush1.msra.mxu0 0.0
    %144 = vmatprep.subr.mxu0 0.0
    %145 = vmatpush1.msra.mxu0 0.0
    %146 = vmatprep.subr.mxu0 0.0
    %147 = vmatpush1.msra.mxu0 0.0
    %148 = vmatprep.subr.mxu0 0.0
    %149 = vmatpush1.msra.mxu0 0.0
    %150 = vmatprep.subr.mxu0 0.0
    %151 = vmatpush1.msra.mxu0 0.0
    %152 = vmatprep.subr.mxu0 0.0
    %153 = vmatpush1.msra.mxu0 0.0
    %154 = vmatprep.subr.mxu0 0.0
    %155 = vmatpush1.msra.mxu0 0.0
    %156 = vmatprep.subr.mxu0 0.0
    %157 = vmatpush1.msra.mxu0 0.0
    %158 = vmatprep.subr.mxu0 0.0
    %159 = vmatpush1.msra.mxu0 0.0
    %160 = vmatprep.subr.mxu0 0.0
    %161 = vmatpush1.msra.mxu0 0.0
    %162 = vmatprep.subr.mxu0 0.0
    %163 = vmatpush1.msra.mxu0 0.0
    %164 = vmatprep.subr.mxu0 0.0
    %165 = vmatpush1.msra.mxu0 0.0
    %166 = vmatprep.subr.mxu0 0.0
    %167 = vmatpush1.msra.mxu0 0.0
    %168 = vmatprep.subr.mxu0 0.0
    %169 = vmatpush1.msra.mxu0 0.0
    %170 = vmatprep.subr.mxu0 0.0
    %171 = vmatpush1.msra.mxu0 0.0
    %172 = vmatprep.subr.mxu0 0.0
    %173 = vmatpush1.msra.mxu0 0.0
    %174 = vmatprep.subr.mxu0 0.0
    %175 = vmatpush1.msra.mxu0 0.0
    %176 = vmatprep.subr.mxu0 0.0
    %177 = vmatpush1.msra.mxu0 0.0
    %178 = vmatprep.subr.mxu0 0.0
    %179 = vmatpush1.msra.mxu0 0.0
    %180 = vmatprep.subr.mxu0 0.0
    %181 = vmatpush1.msra.mxu0 0.0
    %182 = vmatprep.subr.mxu0 0.0
    %183 = vmatpush1.msra.mxu0 0.0
    %184 = vmatprep.subr.mxu0 0.0
    %185 = vmatpush1.msra.mxu0 0.0
    %186 = vmatprep.subr.mxu0 0.0
    %187 = vmatpush1.msra.mxu0 0.0
    %188 = vmatprep.subr.mxu0 0.0
    %189 = vmatpush1.msra.mxu0 0.0
    %190 = vmatprep.subr.mxu0 0.0
    %191 = vmatpush1.msra.mxu0 0.0
    %192 = vmatprep.subr.mxu0 0.0
    %193 = vmatpush1.msra.mxu0 0.0
    %194 = vmatprep.subr.mxu0 0.0
    %195 = vmatpush1.msra.mxu0 0.0
    %196 = vmatprep.mubr.f32.mxu0 0.0
    %197 = vmatmul.mubr.f32.gmra.mrb[0].mxu0 %v130
    %v198 = vpop.f32.mrb[0].mxu0
    %v199 = vadd.f32 0.0, %v198
    %v200 = vpop.f32.mrb[0].mxu0
    %201 = vdwg.mxu0
    %v202 = vadd.f32 %v120, %v199
    %v203 = vxor.u32 %v202, 2147483648
    %v204 = vmul.f32 %v203, 1.442695
    %v205 = vpow.pop %v204
    %v206 = vadd.f32 %v205, 1.0
    %v207 = vrcp.pop %v206
    %v208 = vmul.f32 1.0, %v207
    %v209 = vtanh.pop %v202
    %v210 = vsel %vm127, %v208, %v209
    %v211 = vmul.f32 %v210, 0.0
    %213 = vrot.lane.b32.xlu0 %v210, 32
    %v214 = vpop.permute.xlu0 %213
    %v216 = vmul.f32 %v210, %v214
    %218 = vrot.lane.b32.xlu0 %v216, 32
    %v219 = vpop.permute.xlu0 %218
    %v221 = vadd.f32 %v211, %v219
    %v222 = vtanh.pop %v221
    %224 = vrot.lane.b32.xlu0 %v222, 32
    %v225 = vpop.permute.xlu0 %224
    %v227 = vmul.f32 %v210, %v225
    %229 = vrot.lane.b32.xlu0 %v227, 64
    %v230 = vpop.permute.xlu0 %229
    %v231 = vsel %vm128, %v230, 0
    %233 = vmatprep.subr.mxu0 0.0
    %234 = vmatpush1.msra.mxu0 %v123
    %235 = vmatprep.subr.mxu0 0.0
    %236 = vmatpush1.msra.mxu0 %v124
    %237 = vmatprep.subr.mxu0 0.0
    %238 = vmatpush1.msra.mxu0 %v125
    %239 = vmatprep.subr.mxu0 0.0
    %240 = vmatpush1.msra.mxu0 %v126
    %241 = vmatprep.subr.mxu0 0.0
    %242 = vmatpush1.msra.mxu0 0.0
    %243 = vmatprep.subr.mxu0 0.0
    %244 = vmatpush1.msra.mxu0 0.0
    %245 = vmatprep.subr.mxu0 0.0
    %246 = vmatpush1.msra.mxu0 0.0
    %247 = vmatprep.subr.mxu0 0.0
    %248 = vmatpush1.msra.mxu0 0.0
    %249 = vmatprep.subr.mxu0 0.0
    %250 = vmatpush1.msra.mxu0 0.0
    %251 = vmatprep.subr.mxu0 0.0
    %252 = vmatpush1.msra.mxu0 0.0
    %253 = vmatprep.subr.mxu0 0.0
    %254 = vmatpush1.msra.mxu0 0.0
    %255 = vmatprep.subr.mxu0 0.0
    %256 = vmatpush1.msra.mxu0 0.0
    %257 = vmatprep.subr.mxu0 0.0
    %258 = vmatpush1.msra.mxu0 0.0
    %259 = vmatprep.subr.mxu0 0.0
    %260 = vmatpush1.msra.mxu0 0.0
    %261 = vmatprep.subr.mxu0 0.0
    %262 = vmatpush1.msra.mxu0 0.0
    %263 = vmatprep.subr.mxu0 0.0
    %264 = vmatpush1.msra.mxu0 0.0
    %265 = vmatprep.subr.mxu0 0.0
    %266 = vmatpush1.msra.mxu0 0.0
    %267 = vmatprep.subr.mxu0 0.0
    %268 = vmatpush1.msra.mxu0 0.0
    %269 = vmatprep.subr.mxu0 0.0
    %270 = vmatpush1.msra.mxu0 0.0
    %271 = vmatprep.subr.mxu0 0.0
    %272 = vmatpush1.msra.mxu0 0.0
    %273 = vmatprep.subr.mxu0 0.0
    %274 = vmatpush1.msra.mxu0 0.0
    %275 = vmatprep.subr.mxu0 0.0
    %276 = vmatpush1.msra.mxu0 0.0
    %277 = vmatprep.subr.mxu0 0.0
    %278 = vmatpush1.msra.mxu0 0.0
    %279 = vmatprep.subr.mxu0 0.0
    %280 = vmatpush1.msra.mxu0 0.0
    %281 = vmatprep.subr.mxu0 0.0
    %282 = vmatpush1.msra.mxu0 0.0
    %283 = vmatprep.subr.mxu0 0.0
    %284 = vmatpush1.msra.mxu0 0.0
    %285 = vmatprep.subr.mxu0 0.0
    %286 = vmatpush1.msra.mxu0 0.0
    %287 = vmatprep.subr.mxu0 0.0
    %288 = vmatpush1.msra.mxu0 0.0
    %289 = vmatprep.subr.mxu0 0.0
    %290 = vmatpush1.msra.mxu0 0.0
    %291 = vmatprep.subr.mxu0 0.0
    %292 = vmatpush1.msra.mxu0 0.0
    %293 = vmatprep.subr.mxu0 0.0
    %294 = vmatpush1.msra.mxu0 0.0
    %295 = vmatprep.subr.mxu0 0.0
    %296 = vmatpush1.msra.mxu0 0.0
    %297 = vmatprep.mubr.f32.mxu0 0.0
    %298 = vmatmul.mubr.f32.gmra.mrb[0].mxu0 %v231
    %v299 = vpop.f32.mrb[0].mxu0
    %v300 = vadd.f32 0.0, %v299
    %v301 = vpop.f32.mrb[0].mxu0
    %302 = vdwg.mxu0
    %v304 = vrot.slane %v300, 7
    %v306 = vadd.f32 %v120, %v304
    %v307 = vxor.u32 %v306, 2147483648
    %v308 = vmul.f32 %v307, 1.442695
    %v309 = vpow.pop %v308
    %v310 = vadd.f32 %v309, 1.0
    %v311 = vrcp.pop %v310
    %v312 = vmul.f32 1.0, %v311
    %v313 = vtanh.pop %v306
    %v314 = vsel %vm127, %v312, %v313
    %v316 = vrot.slane %v221, 7
    %v318 = vmul.f32 %v314, %v316
    %320 = vrot.lane.b32.xlu0 %v314, 32
    %v321 = vpop.permute.xlu0 %320
    %v323 = vmul.f32 %v314, %v321
    %325 = vrot.lane.b32.xlu0 %v323, 32
    %v326 = vpop.permute.xlu0 %325
    %v328 = vadd.f32 %v318, %v326
    %v329 = vtanh.pop %v328
    %331 = vrot.lane.b32.xlu0 %v329, 32
    %v332 = vpop.permute.xlu0 %331
    %v334 = vmul.f32 %v314, %v332
    %v336 = vrot.slane %v334, 1
    %337 = vrot.lane.b32.xlu0 %v336, 64
    %v338 = vpop.permute.xlu0 %337
    %v339 = vsel %vm128, %v338, 0
    %341 = vmatprep.subr.mxu0 0.0
    %342 = vmatpush1.msra.mxu0 %v123
    %343 = vmatprep.subr.mxu0 0.0
    %344 = vmatpush1.msra.mxu0 %v124
    %345 = vmatprep.subr.mxu0 0.0
    %346 = vmatpush1.msra.mxu0 %v125
    %347 = vmatprep.subr.mxu0 0.0
    %348 = vmatpush1.msra.mxu0 %v126
    %349 = vmatprep.subr.mxu0 0.0
    %350 = vmatpush1.msra.mxu0 0.0
    %351 = vmatprep.subr.mxu0 0.0
    %352 = vmatpush1.msra.mxu0 0.0
    %353 = vmatprep.subr.mxu0 0.0
    %354 = vmatpush1.msra.mxu0 0.0
    %355 = vmatprep.subr.mxu0 0.0
    %356 = vmatpush1.msra.mxu0 0.0
    %357 = vmatprep.subr.mxu0 0.0
    %358 = vmatpush1.msra.mxu0 0.0
    %359 = vmatprep.subr.mxu0 0.0
    %360 = vmatpush1.msra.mxu0 0.0
    %361 = vmatprep.subr.mxu0 0.0
    %362 = vmatpush1.msra.mxu0 0.0
    %363 = vmatprep.subr.mxu0 0.0
    %364 = vmatpush1.msra.mxu0 0.0
    %365 = vmatprep.subr.mxu0 0.0
    %366 = vmatpush1.msra.mxu0 0.0
    %367 = vmatprep.subr.mxu0 0.0
    %368 = vmatpush1.msra.mxu0 0.0
    %369 = vmatprep.subr.mxu0 0.0
    %370 = vmatpush1.msra.mxu0 0.0
    %371 = vmatprep.subr.mxu0 0.0
    %372 = vmatpush1.msra.mxu0 0.0
    %373 = vmatprep.subr.mxu0 0.0
    %374 = vmatpush1.msra.mxu0 0.0
    %375 = vmatprep.subr.mxu0 0.0
    %376 = vmatpush1.msra.mxu0 0.0
    %377 = vmatprep.subr.mxu0 0.0
    %378 = vmatpush1.msra.mxu0 0.0
    %379 = vmatprep.subr.mxu0 0.0
    %380 = vmatpush1.msra.mxu0 0.0
    %381 = vmatprep.subr.mxu0 0.0
    %382 = vmatpush1.msra.mxu0 0.0
    %383 = vmatprep.subr.mxu0 0.0
    %384 = vmatpush1.msra.mxu0 0.0
    %385 = vmatprep.subr.mxu0 0.0
    %386 = vmatpush1.msra.mxu0 0.0
    %387 = vmatprep.subr.mxu0 0.0
    %388 = vmatpush1.msra.mxu0 0.0
    %389 = vmatprep.subr.mxu0 0.0
    %390 = vmatpush1.msra.mxu0 0.0
    %391 = vmatprep.subr.mxu0 0.0
    %392 = vmatpush1.msra.mxu0 0.0
    %393 = vmatprep.subr.mxu0 0.0
    %394 = vmatpush1.msra.mxu0 0.0
    %395 = vmatprep.subr.mxu0 0.0
    %396 = vmatpush1.msra.mxu0 0.0
    %397 = vmatprep.subr.mxu0 0.0
    %398 = vmatpush1.msra.mxu0 0.0
    %399 = vmatprep.subr.mxu0 0.0
    %400 = vmatpush1.msra.mxu0 0.0
    %401 = vmatprep.subr.mxu0 0.0
    %402 = vmatpush1.msra.mxu0 0.0
    %403 = vmatprep.subr.mxu0 0.0
    %404 = vmatpush1.msra.mxu0 0.0
    %405 = vmatprep.mubr.f32.mxu0 0.0
    %406 = vmatmul.mubr.f32.gmra.mrb[0].mxu0 %v339
    %v407 = vpop.f32.mrb[0].mxu0
    %v408 = vadd.f32 0.0, %v407
    %v409 = vpop.f32.mrb[0].mxu0
    %410 = vdwg.mxu0
    %v412 = vrot.slane %v408, 6
    %v414 = vadd.f32 %v120, %v412
    %v415 = vxor.u32 %v414, 2147483648
    %v416 = vmul.f32 %v415, 1.442695
    %v417 = vpow.pop %v416
    %v418 = vadd.f32 %v417, 1.0
    %v419 = vrcp.pop %v418
    %v420 = vmul.f32 1.0, %v419
    %v421 = vtanh.pop %v414
    %v422 = vsel %vm127, %v420, %v421
    %v424 = vrot.slane %v328, 7
    %v426 = vmul.f32 %v422, %v424
    %428 = vrot.lane.b32.xlu0 %v422, 32
    %v429 = vpop.permute.xlu0 %428
    %v431 = vmul.f32 %v422, %v429
    %433 = vrot.lane.b32.xlu0 %v431, 32
    %v434 = vpop.permute.xlu0 %433
    %v436 = vadd.f32 %v426, %v434
    %v437 = vtanh.pop %v436
    %439 = vrot.lane.b32.xlu0 %v437, 32
    %v440 = vpop.permute.xlu0 %439
    %v442 = vmul.f32 %v422, %v440
    %v444 = vrot.slane %v442, 2
    %445 = vrot.lane.b32.xlu0 %v444, 64
    %v446 = vpop.permute.xlu0 %445
    %v447 = vsel %vm128, %v446, 0
    %449 = vmatprep.subr.mxu0 0.0
    %450 = vmatpush1.msra.mxu0 %v123
    %451 = vmatprep.subr.mxu0 0.0
    %452 = vmatpush1.msra.mxu0 %v124
    %453 = vmatprep.subr.mxu0 0.0
    %454 = vmatpush1.msra.mxu0 %v125
    %455 = vmatprep.subr.mxu0 0.0
    %456 = vmatpush1.msra.mxu0 %v126
    %457 = vmatprep.subr.mxu0 0.0
    %458 = vmatpush1.msra.mxu0 0.0
    %459 = vmatprep.subr.mxu0 0.0
    %460 = vmatpush1.msra.mxu0 0.0
    %461 = vmatprep.subr.mxu0 0.0
    %462 = vmatpush1.msra.mxu0 0.0
    %463 = vmatprep.subr.mxu0 0.0
    %464 = vmatpush1.msra.mxu0 0.0
    %465 = vmatprep.subr.mxu0 0.0
    %466 = vmatpush1.msra.mxu0 0.0
    %467 = vmatprep.subr.mxu0 0.0
    %468 = vmatpush1.msra.mxu0 0.0
    %469 = vmatprep.subr.mxu0 0.0
    %470 = vmatpush1.msra.mxu0 0.0
    %471 = vmatprep.subr.mxu0 0.0
    %472 = vmatpush1.msra.mxu0 0.0
    %473 = vmatprep.subr.mxu0 0.0
    %474 = vmatpush1.msra.mxu0 0.0
    %475 = vmatprep.subr.mxu0 0.0
    %476 = vmatpush1.msra.mxu0 0.0
    %477 = vmatprep.subr.mxu0 0.0
    %478 = vmatpush1.msra.mxu0 0.0
    %479 = vmatprep.subr.mxu0 0.0
    %480 = vmatpush1.msra.mxu0 0.0
    %481 = vmatprep.subr.mxu0 0.0
    %482 = vmatpush1.msra.mxu0 0.0
    %483 = vmatprep.subr.mxu0 0.0
    %484 = vmatpush1.msra.mxu0 0.0
    %485 = vmatprep.subr.mxu0 0.0
    %486 = vmatpush1.msra.mxu0 0.0
    %487 = vmatprep.subr.mxu0 0.0
    %488 = vmatpush1.msra.mxu0 0.0
    %489 = vmatprep.subr.mxu0 0.0
    %490 = vmatpush1.msra.mxu0 0.0
    %491 = vmatprep.subr.mxu0 0.0
    %492 = vmatpush1.msra.mxu0 0.0
    %493 = vmatprep.subr.mxu0 0.0
    %494 = vmatpush1.msra.mxu0 0.0
    %495 = vmatprep.subr.mxu0 0.0
    %496 = vmatpush1.msra.mxu0 0.0
    %497 = vmatprep.subr.mxu0 0.0
    %498 = vmatpush1.msra.mxu0 0.0
    %499 = vmatprep.subr.mxu0 0.0
    %500 = vmatpush1.msra.mxu0 0.0
    %501 = vmatprep.subr.mxu0 0.0
    %502 = vmatpush1.msra.mxu0 0.0
    %503 = vmatprep.subr.mxu0 0.0
    %504 = vmatpush1.msra.mxu0 0.0
    %505 = vmatprep.subr.mxu0 0.0
    %506 = vmatpush1.msra.mxu0 0.0
    %507 = vmatprep.subr.mxu0 0.0
    %508 = vmatpush1.msra.mxu0 0.0
    %509 = vmatprep.subr.mxu0 0.0
    %510 = vmatpush1.msra.mxu0 0.0
    %511 = vmatprep.subr.mxu0 0.0
    %512 = vmatpush1.msra.mxu0 0.0
    %513 = vmatprep.mubr.f32.mxu0 0.0
    %514 = vmatmul.mubr.f32.gmra.mrb[0].mxu0 %v447
    %v515 = vpop.f32.mrb[0].mxu0
    %v516 = vadd.f32 0.0, %v515
    %v517 = vpop.f32.mrb[0].mxu0
    %518 = vdwg.mxu0
    %v520 = vrot.slane %v516, 5
    %v522 = vadd.f32 %v120, %v520
    %v523 = vxor.u32 %v522, 2147483648
    %v524 = vmul.f32 %v523, 1.442695
    %v525 = vpow.pop %v524
    %v526 = vadd.f32 %v525, 1.0
    %v527 = vrcp.pop %v526
    %v528 = vmul.f32 1.0, %v527
    %v529 = vtanh.pop %v522
    %v530 = vsel %vm127, %v528, %v529
    %v532 = vrot.slane %v436, 7
    %v534 = vmul.f32 %v530, %v532
    %536 = vrot.lane.b32.xlu0 %v530, 32
    %v537 = vpop.permute.xlu0 %536
    %v539 = vmul.f32 %v530, %v537
    %541 = vrot.lane.b32.xlu0 %v539, 32
    %v542 = vpop.permute.xlu0 %541
    %v544 = vadd.f32 %v534, %v542
    %v545 = vtanh.pop %v544
    %547 = vrot.lane.b32.xlu0 %v545, 32
    %v548 = vpop.permute.xlu0 %547
    %v550 = vmul.f32 %v530, %v548
    %v552 = vrot.slane %v550, 3
    %553 = vrot.lane.b32.xlu0 %v552, 64
    %v554 = vpop.permute.xlu0 %553
    %v555 = vsel %vm128, %v554, 0
    %557 = vmatprep.subr.mxu0 0.0
    %558 = vmatpush1.msra.mxu0 %v123
    %559 = vmatprep.subr.mxu0 0.0
    %560 = vmatpush1.msra.mxu0 %v124
    %561 = vmatprep.subr.mxu0 0.0
    %562 = vmatpush1.msra.mxu0 %v125
    %563 = vmatprep.subr.mxu0 0.0
    %564 = vmatpush1.msra.mxu0 %v126
    %565 = vmatprep.subr.mxu0 0.0
    %566 = vmatpush1.msra.mxu0 0.0
    %567 = vmatprep.subr.mxu0 0.0
    %568 = vmatpush1.msra.mxu0 0.0
    %569 = vmatprep.subr.mxu0 0.0
    %570 = vmatpush1.msra.mxu0 0.0
    %571 = vmatprep.subr.mxu0 0.0
    %572 = vmatpush1.msra.mxu0 0.0
    %573 = vmatprep.subr.mxu0 0.0
    %574 = vmatpush1.msra.mxu0 0.0
    %575 = vmatprep.subr.mxu0 0.0
    %576 = vmatpush1.msra.mxu0 0.0
    %577 = vmatprep.subr.mxu0 0.0
    %578 = vmatpush1.msra.mxu0 0.0
    %579 = vmatprep.subr.mxu0 0.0
    %580 = vmatpush1.msra.mxu0 0.0
    %581 = vmatprep.subr.mxu0 0.0
    %582 = vmatpush1.msra.mxu0 0.0
    %583 = vmatprep.subr.mxu0 0.0
    %584 = vmatpush1.msra.mxu0 0.0
    %585 = vmatprep.subr.mxu0 0.0
    %586 = vmatpush1.msra.mxu0 0.0
    %587 = vmatprep.subr.mxu0 0.0
    %588 = vmatpush1.msra.mxu0 0.0
    %589 = vmatprep.subr.mxu0 0.0
    %590 = vmatpush1.msra.mxu0 0.0
    %591 = vmatprep.subr.mxu0 0.0
    %592 = vmatpush1.msra.mxu0 0.0
    %593 = vmatprep.subr.mxu0 0.0
    %594 = vmatpush1.msra.mxu0 0.0
    %595 = vmatprep.subr.mxu0 0.0
    %596 = vmatpush1.msra.mxu0 0.0
    %597 = vmatprep.subr.mxu0 0.0
    %598 = vmatpush1.msra.mxu0 0.0
    %599 = vmatprep.subr.mxu0 0.0
    %600 = vmatpush1.msra.mxu0 0.0
    %601 = vmatprep.subr.mxu0 0.0
    %602 = vmatpush1.msra.mxu0 0.0
    %603 = vmatprep.subr.mxu0 0.0
    %604 = vmatpush1.msra.mxu0 0.0
    %605 = vmatprep.subr.mxu0 0.0
    %606 = vmatpush1.msra.mxu0 0.0
    %607 = vmatprep.subr.mxu0 0.0
    %608 = vmatpush1.msra.mxu0 0.0
    %609 = vmatprep.subr.mxu0 0.0
    %610 = vmatpush1.msra.mxu0 0.0
    %611 = vmatprep.subr.mxu0 0.0
    %612 = vmatpush1.msra.mxu0 0.0
    %613 = vmatprep.subr.mxu0 0.0
    %614 = vmatpush1.msra.mxu0 0.0
    %615 = vmatprep.subr.mxu0 0.0
    %616 = vmatpush1.msra.mxu0 0.0
    %617 = vmatprep.subr.mxu0 0.0
    %618 = vmatpush1.msra.mxu0 0.0
    %619 = vmatprep.subr.mxu0 0.0
    %620 = vmatpush1.msra.mxu0 0.0
    %621 = vmatprep.mubr.f32.mxu0 0.0
    %622 = vmatmul.mubr.f32.gmra.mrb[0].mxu0 %v555
    %v623 = vpop.f32.mrb[0].mxu0
    %v624 = vadd.f32 0.0, %v623
    %v625 = vpop.f32.mrb[0].mxu0
    %626 = vdwg.mxu0
    %v628 = vrot.slane %v624, 4
    %v630 = vadd.f32 %v120, %v628
    %v631 = vxor.u32 %v630, 2147483648
    %v632 = vmul.f32 %v631, 1.442695
    %v633 = vpow.pop %v632
    %v634 = vadd.f32 %v633, 1.0
    %v635 = vrcp.pop %v634
    %v636 = vmul.f32 1.0, %v635
    %v637 = vtanh.pop %v630
    %v638 = vsel %vm127, %v636, %v637
    %v640 = vrot.slane %v544, 7
    %v642 = vmul.f32 %v638, %v640
    %644 = vrot.lane.b32.xlu0 %v638, 32
    %v645 = vpop.permute.xlu0 %644
    %v647 = vmul.f32 %v638, %v645
    %649 = vrot.lane.b32.xlu0 %v647, 32
    %v650 = vpop.permute.xlu0 %649
    %v652 = vadd.f32 %v642, %v650
    %v653 = vtanh.pop %v652
    %655 = vrot.lane.b32.xlu0 %v653, 32
    %v656 = vpop.permute.xlu0 %655
    %v658 = vmul.f32 %v638, %v656
    %v660 = vrot.slane %v658, 4
    %661 = vrot.lane.b32.xlu0 %v660, 64
    %v662 = vpop.permute.xlu0 %661
    %v663 = vsel %vm128, %v662, 0
    %665 = vmatprep.subr.mxu0 0.0
    %666 = vmatpush1.msra.mxu0 %v123
    %667 = vmatprep.subr.mxu0 0.0
    %668 = vmatpush1.msra.mxu0 %v124
    %669 = vmatprep.subr.mxu0 0.0
    %670 = vmatpush1.msra.mxu0 %v125
    %671 = vmatprep.subr.mxu0 0.0
    %672 = vmatpush1.msra.mxu0 %v126
    %673 = vmatprep.subr.mxu0 0.0
    %674 = vmatpush1.msra.mxu0 0.0
    %675 = vmatprep.subr.mxu0 0.0
    %676 = vmatpush1.msra.mxu0 0.0
    %677 = vmatprep.subr.mxu0 0.0
    %678 = vmatpush1.msra.mxu0 0.0
    %679 = vmatprep.subr.mxu0 0.0
    %680 = vmatpush1.msra.mxu0 0.0
    %681 = vmatprep.subr.mxu0 0.0
    %682 = vmatpush1.msra.mxu0 0.0
    %683 = vmatprep.subr.mxu0 0.0
    %684 = vmatpush1.msra.mxu0 0.0
    %685 = vmatprep.subr.mxu0 0.0
    %686 = vmatpush1.msra.mxu0 0.0
    %687 = vmatprep.subr.mxu0 0.0
    %688 = vmatpush1.msra.mxu0 0.0
    %689 = vmatprep.subr.mxu0 0.0
    %690 = vmatpush1.msra.mxu0 0.0
    %691 = vmatprep.subr.mxu0 0.0
    %692 = vmatpush1.msra.mxu0 0.0
    %693 = vmatprep.subr.mxu0 0.0
    %694 = vmatpush1.msra.mxu0 0.0
    %695 = vmatprep.subr.mxu0 0.0
    %696 = vmatpush1.msra.mxu0 0.0
    %697 = vmatprep.subr.mxu0 0.0
    %698 = vmatpush1.msra.mxu0 0.0
    %699 = vmatprep.subr.mxu0 0.0
    %700 = vmatpush1.msra.mxu0 0.0
    %701 = vmatprep.subr.mxu0 0.0
    %702 = vmatpush1.msra.mxu0 0.0
    %703 = vmatprep.subr.mxu0 0.0
    %704 = vmatpush1.msra.mxu0 0.0
    %705 = vmatprep.subr.mxu0 0.0
    %706 = vmatpush1.msra.mxu0 0.0
    %707 = vmatprep.subr.mxu0 0.0
    %708 = vmatpush1.msra.mxu0 0.0
    %709 = vmatprep.subr.mxu0 0.0
    %710 = vmatpush1.msra.mxu0 0.0
    %711 = vmatprep.subr.mxu0 0.0
    %712 = vmatpush1.msra.mxu0 0.0
    %713 = vmatprep.subr.mxu0 0.0
    %714 = vmatpush1.msra.mxu0 0.0
    %715 = vmatprep.subr.mxu0 0.0
    %716 = vmatpush1.msra.mxu0 0.0
    %717 = vmatprep.subr.mxu0 0.0
    %718 = vmatpush1.msra.mxu0 0.0
    %719 = vmatprep.subr.mxu0 0.0
    %720 = vmatpush1.msra.mxu0 0.0
    %721 = vmatprep.subr.mxu0 0.0
    %722 = vmatpush1.msra.mxu0 0.0
    %723 = vmatprep.subr.mxu0 0.0
    %724 = vmatpush1.msra.mxu0 0.0
    %725 = vmatprep.subr.mxu0 0.0
    %726 = vmatpush1.msra.mxu0 0.0
    %727 = vmatprep.subr.mxu0 0.0
    %728 = vmatpush1.msra.mxu0 0.0
    %729 = vmatprep.mubr.f32.mxu0 0.0
    %730 = vmatmul.mubr.f32.gmra.mrb[0].mxu0 %v663
    %v731 = vpop.f32.mrb[0].mxu0
    %v732 = vadd.f32 0.0, %v731
    %v733 = vpop.f32.mrb[0].mxu0
    %734 = vdwg.mxu0
    %v736 = vrot.slane %v732, 3
    %v738 = vadd.f32 %v120, %v736
    %v739 = vxor.u32 %v738, 2147483648
    %v740 = vmul.f32 %v739, 1.442695
    %v741 = vpow.pop %v740
    %v742 = vadd.f32 %v741, 1.0
    %v743 = vrcp.pop %v742
    %v744 = vmul.f32 1.0, %v743
    %v745 = vtanh.pop %v738
    %v746 = vsel %vm127, %v744, %v745
    %v748 = vrot.slane %v652, 7
    %v750 = vmul.f32 %v746, %v748
    %752 = vrot.lane.b32.xlu0 %v746, 32
    %v753 = vpop.permute.xlu0 %752
    %v755 = vmul.f32 %v746, %v753
    %757 = vrot.lane.b32.xlu0 %v755, 32
    %v758 = vpop.permute.xlu0 %757
    %v760 = vadd.f32 %v750, %v758
    %v761 = vtanh.pop %v760
    %763 = vrot.lane.b32.xlu0 %v761, 32
    %v764 = vpop.permute.xlu0 %763
    %v766 = vmul.f32 %v746, %v764
    %v768 = vrot.slane %v766, 5
    %769 = vrot.lane.b32.xlu0 %v768, 64
    %v770 = vpop.permute.xlu0 %769
    %v771 = vsel %vm128, %v770, 0
    %773 = vmatprep.subr.mxu0 0.0
    %774 = vmatpush1.msra.mxu0 %v123
    %775 = vmatprep.subr.mxu0 0.0
    %776 = vmatpush1.msra.mxu0 %v124
    %777 = vmatprep.subr.mxu0 0.0
    %778 = vmatpush1.msra.mxu0 %v125
    %779 = vmatprep.subr.mxu0 0.0
    %780 = vmatpush1.msra.mxu0 %v126
    %781 = vmatprep.subr.mxu0 0.0
    %782 = vmatpush1.msra.mxu0 0.0
    %783 = vmatprep.subr.mxu0 0.0
    %784 = vmatpush1.msra.mxu0 0.0
    %785 = vmatprep.subr.mxu0 0.0
    %786 = vmatpush1.msra.mxu0 0.0
    %787 = vmatprep.subr.mxu0 0.0
    %788 = vmatpush1.msra.mxu0 0.0
    %789 = vmatprep.subr.mxu0 0.0
    %790 = vmatpush1.msra.mxu0 0.0
    %791 = vmatprep.subr.mxu0 0.0
    %792 = vmatpush1.msra.mxu0 0.0
    %793 = vmatprep.subr.mxu0 0.0
    %794 = vmatpush1.msra.mxu0 0.0
    %795 = vmatprep.subr.mxu0 0.0
    %796 = vmatpush1.msra.mxu0 0.0
    %797 = vmatprep.subr.mxu0 0.0
    %798 = vmatpush1.msra.mxu0 0.0
    %799 = vmatprep.subr.mxu0 0.0
    %800 = vmatpush1.msra.mxu0 0.0
    %801 = vmatprep.subr.mxu0 0.0
    %802 = vmatpush1.msra.mxu0 0.0
    %803 = vmatprep.subr.mxu0 0.0
    %804 = vmatpush1.msra.mxu0 0.0
    %805 = vmatprep.subr.mxu0 0.0
    %806 = vmatpush1.msra.mxu0 0.0
    %807 = vmatprep.subr.mxu0 0.0
    %808 = vmatpush1.msra.mxu0 0.0
    %809 = vmatprep.subr.mxu0 0.0
    %810 = vmatpush1.msra.mxu0 0.0
    %811 = vmatprep.subr.mxu0 0.0
    %812 = vmatpush1.msra.mxu0 0.0
    %813 = vmatprep.subr.mxu0 0.0
    %814 = vmatpush1.msra.mxu0 0.0
    %815 = vmatprep.subr.mxu0 0.0
    %816 = vmatpush1.msra.mxu0 0.0
    %817 = vmatprep.subr.mxu0 0.0
    %818 = vmatpush1.msra.mxu0 0.0
    %819 = vmatprep.subr.mxu0 0.0
    %820 = vmatpush1.msra.mxu0 0.0
    %821 = vmatprep.subr.mxu0 0.0
    %822 = vmatpush1.msra.mxu0 0.0
    %823 = vmatprep.subr.mxu0 0.0
    %824 = vmatpush1.msra.mxu0 0.0
    %825 = vmatprep.subr.mxu0 0.0
    %826 = vmatpush1.msra.mxu0 0.0
    %827 = vmatprep.subr.mxu0 0.0
    %828 = vmatpush1.msra.mxu0 0.0
    %829 = vmatprep.subr.mxu0 0.0
    %830 = vmatpush1.msra.mxu0 0.0
    %831 = vmatprep.subr.mxu0 0.0
    %832 = vmatpush1.msra.mxu0 0.0
    %833 = vmatprep.subr.mxu0 0.0
    %834 = vmatpush1.msra.mxu0 0.0
    %835 = vmatprep.subr.mxu0 0.0
    %836 = vmatpush1.msra.mxu0 0.0
    %837 = vmatprep.mubr.f32.mxu0 0.0
    %838 = vmatmul.mubr.f32.gmra.mrb[0].mxu0 %v771
    %v839 = vpop.f32.mrb[0].mxu0
    %v840 = vadd.f32 0.0, %v839
    %v841 = vpop.f32.mrb[0].mxu0
    %842 = vdwg.mxu0
    %v844 = vrot.slane %v840, 2
    %v846 = vadd.f32 %v120, %v844
    %v847 = vxor.u32 %v846, 2147483648
    %v848 = vmul.f32 %v847, 1.442695
    %v849 = vpow.pop %v848
    %v850 = vadd.f32 %v849, 1.0
    %v851 = vrcp.pop %v850
    %v852 = vmul.f32 1.0, %v851
    %v853 = vtanh.pop %v846
    %v854 = vsel %vm127, %v852, %v853
    %v856 = vrot.slane %v760, 7
    %v858 = vmul.f32 %v854, %v856
    %860 = vrot.lane.b32.xlu0 %v854, 32
    %v861 = vpop.permute.xlu0 %860
    %v863 = vmul.f32 %v854, %v861
    %865 = vrot.lane.b32.xlu0 %v863, 32
    %v866 = vpop.permute.xlu0 %865
    %v868 = vadd.f32 %v858, %v866
    %v869 = vtanh.pop %v868
    %871 = vrot.lane.b32.xlu0 %v869, 32
    %v872 = vpop.permute.xlu0 %871
    %v874 = vmul.f32 %v854, %v872
    %v876 = vrot.slane %v874, 6
    %877 = vrot.lane.b32.xlu0 %v876, 64
    %v878 = vpop.permute.xlu0 %877
    %v879 = vsel %vm128, %v878, 0
    %881 = vmatprep.subr.mxu0 0.0
    %882 = vmatpush1.msra.mxu0 %v123
    %883 = vmatprep.subr.mxu0 0.0
    %884 = vmatpush1.msra.mxu0 %v124
    %885 = vmatprep.subr.mxu0 0.0
    %886 = vmatpush1.msra.mxu0 %v125
    %887 = vmatprep.subr.mxu0 0.0
    %888 = vmatpush1.msra.mxu0 %v126
    %889 = vmatprep.subr.mxu0 0.0
    %890 = vmatpush1.msra.mxu0 0.0
    %891 = vmatprep.subr.mxu0 0.0
    %892 = vmatpush1.msra.mxu0 0.0
    %893 = vmatprep.subr.mxu0 0.0
    %894 = vmatpush1.msra.mxu0 0.0
    %895 = vmatprep.subr.mxu0 0.0
    %896 = vmatpush1.msra.mxu0 0.0
    %897 = vmatprep.subr.mxu0 0.0
    %898 = vmatpush1.msra.mxu0 0.0
    %899 = vmatprep.subr.mxu0 0.0
    %900 = vmatpush1.msra.mxu0 0.0
    %901 = vmatprep.subr.mxu0 0.0
    %902 = vmatpush1.msra.mxu0 0.0
    %903 = vmatprep.subr.mxu0 0.0
    %904 = vmatpush1.msra.mxu0 0.0
    %905 = vmatprep.subr.mxu0 0.0
    %906 = vmatpush1.msra.mxu0 0.0
    %907 = vmatprep.subr.mxu0 0.0
    %908 = vmatpush1.msra.mxu0 0.0
    %909 = vmatprep.subr.mxu0 0.0
    %910 = vmatpush1.msra.mxu0 0.0
    %911 = vmatprep.subr.mxu0 0.0
    %912 = vmatpush1.msra.mxu0 0.0
    %913 = vmatprep.subr.mxu0 0.0
    %914 = vmatpush1.msra.mxu0 0.0
    %915 = vmatprep.subr.mxu0 0.0
    %916 = vmatpush1.msra.mxu0 0.0
    %917 = vmatprep.subr.mxu0 0.0
    %918 = vmatpush1.msra.mxu0 0.0
    %919 = vmatprep.subr.mxu0 0.0
    %920 = vmatpush1.msra.mxu0 0.0
    %921 = vmatprep.subr.mxu0 0.0
    %922 = vmatpush1.msra.mxu0 0.0
    %923 = vmatprep.subr.mxu0 0.0
    %924 = vmatpush1.msra.mxu0 0.0
    %925 = vmatprep.subr.mxu0 0.0
    %926 = vmatpush1.msra.mxu0 0.0
    %927 = vmatprep.subr.mxu0 0.0
    %928 = vmatpush1.msra.mxu0 0.0
    %929 = vmatprep.subr.mxu0 0.0
    %930 = vmatpush1.msra.mxu0 0.0
    %931 = vmatprep.subr.mxu0 0.0
    %932 = vmatpush1.msra.mxu0 0.0
    %933 = vmatprep.subr.mxu0 0.0
    %934 = vmatpush1.msra.mxu0 0.0
    %935 = vmatprep.subr.mxu0 0.0
    %936 = vmatpush1.msra.mxu0 0.0
    %937 = vmatprep.subr.mxu0 0.0
    %938 = vmatpush1.msra.mxu0 0.0
    %939 = vmatprep.subr.mxu0 0.0
    %940 = vmatpush1.msra.mxu0 0.0
    %941 = vmatprep.subr.mxu0 0.0
    %942 = vmatpush1.msra.mxu0 0.0
    %943 = vmatprep.subr.mxu0 0.0
    %944 = vmatpush1.msra.mxu0 0.0
    %945 = vmatprep.mubr.f32.mxu0 0.0
    %946 = vmatmul.mubr.f32.gmra.mrb[0].mxu0 %v879
    %v947 = vpop.f32.mrb[0].mxu0
    %v948 = vadd.f32 0.0, %v947
    %v949 = vpop.f32.mrb[0].mxu0
    %950 = vdwg.mxu0
    %v952 = vrot.slane %v948, 1
    %v954 = vadd.f32 %v120, %v952
    %v955 = vxor.u32 %v954, 2147483648
    %v956 = vmul.f32 %v955, 1.442695
    %v957 = vpow.pop %v956
    %v958 = vadd.f32 %v957, 1.0
    %v959 = vrcp.pop %v958
    %v960 = vmul.f32 1.0, %v959
    %v961 = vtanh.pop %v954
    %v962 = vsel %vm127, %v960, %v961
    %v964 = vrot.slane %v868, 7
    %v966 = vmul.f32 %v962, %v964
    %968 = vrot.lane.b32.xlu0 %v962, 32
    %v969 = vpop.permute.xlu0 %968
    %v971 = vmul.f32 %v962, %v969
    %973 = vrot.lane.b32.xlu0 %v971, 32
    %v974 = vpop.permute.xlu0 %973
    %v976 = vadd.f32 %v966, %v974
    %v977 = vtanh.pop %v976
    %979 = vrot.lane.b32.xlu0 %v977, 32
    %v980 = vpop.permute.xlu0 %979
    %v982 = vmul.f32 %v962, %v980
    %v983 = vld [vmem:[#allocation2 + $0x58] sm:$0xff]
    %v984 = vld [vmem:[#allocation2 + $0x60] sm:$0xff]
    %v985 = vld [vmem:[#allocation2 + $0x68] sm:$0xff]
    %v986 = vld [vmem:[#allocation2 + $0x70] sm:$0xff]
    %v987 = vld [vmem:[%s2 + $0x1] sm:$0x1]
    %v989 = vrot.slane %v982, 7
    %990 = vrot.lane.b32.xlu0 %v989, 64
    %v991 = vpop.permute.xlu0 %990
    %v992 = vsel %vm128, %v991, 0
    %994 = vmatprep.subr.mxu0 0.0
    %995 = vmatpush1.msra.mxu0 %v983
    %996 = vmatprep.subr.mxu0 0.0
    %997 = vmatpush1.msra.mxu0 %v984
    %998 = vmatprep.subr.mxu0 0.0
    %999 = vmatpush1.msra.mxu0 %v985
    %1000 = vmatprep.subr.mxu0 0.0
    %1001 = vmatpush1.msra.mxu0 %v986
    %1002 = vmatprep.subr.mxu0 0.0
    %1003 = vmatpush1.msra.mxu0 0.0
    %1004 = vmatprep.subr.mxu0 0.0
    %1005 = vmatpush1.msra.mxu0 0.0
    %1006 = vmatprep.subr.mxu0 0.0
    %1007 = vmatpush1.msra.mxu0 0.0
    %1008 = vmatprep.subr.mxu0 0.0
    %1009 = vmatpush1.msra.mxu0 0.0
    %1010 = vmatprep.subr.mxu0 0.0
    %1011 = vmatpush1.msra.mxu0 0.0
    %1012 = vmatprep.subr.mxu0 0.0
    %1013 = vmatpush1.msra.mxu0 0.0
    %1014 = vmatprep.subr.mxu0 0.0
    %1015 = vmatpush1.msra.mxu0 0.0
    %1016 = vmatprep.subr.mxu0 0.0
    %1017 = vmatpush1.msra.mxu0 0.0
    %1018 = vmatprep.subr.mxu0 0.0
    %1019 = vmatpush1.msra.mxu0 0.0
    %1020 = vmatprep.subr.mxu0 0.0
    %1021 = vmatpush1.msra.mxu0 0.0
    %1022 = vmatprep.subr.mxu0 0.0
    %1023 = vmatpush1.msra.mxu0 0.0
    %1024 = vmatprep.subr.mxu0 0.0
    %1025 = vmatpush1.msra.mxu0 0.0
    %1026 = vmatprep.subr.mxu0 0.0
    %1027 = vmatpush1.msra.mxu0 0.0
    %1028 = vmatprep.subr.mxu0 0.0
    %1029 = vmatpush1.msra.mxu0 0.0
    %1030 = vmatprep.subr.mxu0 0.0
    %1031 = vmatpush1.msra.mxu0 0.0
    %1032 = vmatprep.subr.mxu0 0.0
    %1033 = vmatpush1.msra.mxu0 0.0
    %1034 = vmatprep.subr.mxu0 0.0
    %1035 = vmatpush1.msra.mxu0 0.0
    %1036 = vmatprep.subr.mxu0 0.0
    %1037 = vmatpush1.msra.mxu0 0.0
    %1038 = vmatprep.subr.mxu0 0.0
    %1039 = vmatpush1.msra.mxu0 0.0
    %1040 = vmatprep.subr.mxu0 0.0
    %1041 = vmatpush1.msra.mxu0 0.0
    %1042 = vmatprep.subr.mxu0 0.0
    %1043 = vmatpush1.msra.mxu0 0.0
    %1044 = vmatprep.subr.mxu0 0.0
    %1045 = vmatpush1.msra.mxu0 0.0
    %1046 = vmatprep.subr.mxu0 0.0
    %1047 = vmatpush1.msra.mxu0 0.0
    %1048 = vmatprep.subr.mxu0 0.0
    %1049 = vmatpush1.msra.mxu0 0.0
    %1050 = vmatprep.subr.mxu0 0.0
    %1051 = vmatpush1.msra.mxu0 0.0
    %1052 = vmatprep.subr.mxu0 0.0
    %1053 = vmatpush1.msra.mxu0 0.0
    %1054 = vmatprep.subr.mxu0 0.0
    %1055 = vmatpush1.msra.mxu0 0.0
    %1056 = vmatprep.subr.mxu0 0.0
    %1057 = vmatpush1.msra.mxu0 0.0
    %1058 = vmatprep.mubr.f32.mxu0 0.0
    %1059 = vmatmul.mubr.f32.gmra.mrb[0].mxu0 %v992
    %v1060 = vpop.f32.mrb[0].mxu0
    %v1061 = vadd.f32 %v987, %v1060
    %v1062 = vpop.f32.mrb[0].mxu0
    %1063 = vdwg.mxu0
    %vm1064 = vcmp.lt.s32.totalorder %v30, 64
    %v1065 = vxor.u32 %v1061, 2147483648
    %v1066 = vmul.f32 %v1065, 1.442695
    %v1067 = vpow.pop %v1066
    %v1068 = vadd.f32 %v1067, 1.0
    %v1069 = vrcp.pop %v1068
    %v1070 = vmul.f32 1.0, %v1069
    %v1071 = vsel %vm1064, %v1070, %v1061
    %1072 = vst [vmem:[%s3] sm:$0x1] %v1071
    // Predicated region
    $region18: #{forward.1} parent=1 // pred_check
      _
    $region19: #{forward.1} parent=1 // pred_check_branch
      %1074 = sbr.rel (0) target = $region21
    $region20: #{forward.1} parent=1 // pred_region
      _
    $region21: #{forward.1} parent=1 // pred_fallthru
      _
    // Predicated region
    $region22: #{forward.1} parent=1 // pred_check
      _
    $region23: #{forward.1} parent=1 // pred_check_branch
      %1076 = sbr.rel (0) target = $region25
    $region24: #{forward.1} parent=1 // pred_region
      _
    $region25: #{forward.1} parent=1 // pred_fallthru
      _
    %1077 = vsyncpa [#allocation3], 1

</llo_original>
